<compile_context>
chip_gen: v5e
topology: v5e:2x2
jax: 0.10.0
libtpu: 0.0.40
codegen_flags: <defaults>
</compile_context>

<pallas_src>
import functools

import jax
import jax.numpy as jnp
from jax.experimental import pallas as pl
from jax.experimental.pallas import tpu as pltpu

# Module constants (match the PyTorch __init__).
CIN = 4
COUT = 32
KH = KW = 5
PAD = 2
KP = 128                    # padded contraction length (>= CIN * (W + 2*PAD))


# ----------------------------------------------------------------------------
# General path kernel: conv + clamp_min + clamp_max via banded-weight matmuls.
# ----------------------------------------------------------------------------
def _conv_clamp_kernel(x_ref, wb_ref, b_ref, o_ref, xp_ref, *, H, W, cmin, cmax):
    """One batch element per grid step.

    x_ref : (1, CIN, H, W)     NCHW input tile (VMEM)
    wb_ref: (KH, KP, W*COUT)   banded weights, zero-padded K (VMEM, whole array)
    b_ref : (1, W*COUT)        bias tiled over w (VMEM, whole array)
    o_ref : (1, H, W*COUT)     lane-dense output tile (VMEM)
    xp_ref: (Hp, KP)           scratch: zero-padded image, lane index = ci*Wp + wp
    """
    Wp = W + 2 * PAD

    # Zero halo + K-tail.  Tiny buffer (Hp x 128 f32 ~ 10 KB); re-done per step so the
    # kernel is correct under megacore splitting of the "parallel" batch axis.
    xp_ref[...] = jnp.zeros(xp_ref.shape, xp_ref.dtype)

    # Interior: one contiguous W-lane slab per input channel (4 stores total).
    for ci in range(CIN):
        base = ci * Wp + PAD
        xp_ref[PAD:PAD + H, base:base + W] = x_ref[0, ci, :, :]

    # KH banded matmuls: LHS = contiguous sublane slice of the padded image,
    # RHS = precomputed banded weights.  f32 accumulation in vregs.
    acc = jnp.zeros((H, W * COUT), jnp.float32)
    for kh in range(KH):
        acc = acc + jnp.dot(xp_ref[kh:kh + H, :], wb_ref[kh],
                            preferred_element_type=jnp.float32)

    acc = acc + b_ref[...]                               # (1, W*COUT) broadcasts over H
    acc = jnp.minimum(jnp.maximum(acc, cmin), cmax)      # clamp_min then clamp_max
    o_ref[...] = acc[None].astype(o_ref.dtype)


def _banded_weights(w_oihw, W):
    """Wb[kh, ci*Wp + wp, w*COUT + co] = w[co, ci, kh, wp - w] for 0 <= wp - w < KW."""
    Wp = W + 2 * PAD
    w_t = jnp.transpose(w_oihw, (2, 1, 3, 0)).astype(jnp.float32)   # (KH, CIN, KW, COUT)
    band = (jnp.arange(Wp)[None, :, None]
            == (jnp.arange(W)[None, None, :] + jnp.arange(KW)[:, None, None]))
    band = band.astype(jnp.float32)                                  # (KW, Wp, W)
    wb = jnp.einsum('kpw,acko->acpwo', band, w_t)                    # (KH, CIN, Wp, W, COUT)
    wb = wb.reshape(KH, CIN * Wp, W * COUT)
    return jnp.pad(wb, ((0, 0), (0, KP - CIN * Wp), (0, 0)))         # (KH, 128, W*COUT)


def conv_clamp(x_nchw, w_oihw, bias, cmin, cmax):
    """Conv2d(4,32,5,s=1,p=2) + clamp_min + clamp_max.  x_nchw: (B, CIN, H, W) f32."""
    B, C, H, W = x_nchw.shape
    assert C == CIN
    Wp, Hp = W + 2 * PAD, H + 2 * PAD
    assert CIN * Wp <= KP, "banded single-matmul path needs CIN*(W+2*PAD) <= 128"
    WCO = W * COUT

    # Parameter-side preprocessing (3200 weight values -> banded slabs; done once).
    wb = _banded_weights(w_oihw, W)                                   # (KH, 128, W*COUT)
    b_tiled = jnp.tile(bias.astype(jnp.float32), W).reshape(1, WCO)   # (1, W*COUT)

    kernel = functools.partial(_conv_clamp_kernel, H=H, W=W,
                               cmin=float(cmin), cmax=float(cmax))

    out_hwc = pl.pallas_call(
        kernel,
        out_shape=jax.ShapeDtypeStruct((B, H, WCO), jnp.float32),
        grid=(B,),
        in_specs=[
            pl.BlockSpec((1, CIN, H, W), lambda b: (b, 0, 0, 0)),
            pl.BlockSpec((KH, KP, WCO), lambda b: (0, 0, 0)),
            pl.BlockSpec((1, WCO), lambda b: (0, 0)),
        ],
        out_specs=pl.BlockSpec((1, H, WCO), lambda b: (b, 0, 0)),
        scratch_shapes=[pltpu.VMEM((Hp, KP), jnp.float32)],
        compiler_params=pltpu.CompilerParams(dimension_semantics=("parallel",)),
    )(x_nchw.astype(jnp.float32), wb, b_tiled)

    # (B, H, W*COUT) -> NCHW.  The reshape is a free trailing-dim split; the transpose
    # is the single remaining wrapper pass (exact-size, no channel padding).
    return jnp.transpose(out_hwc.reshape(B, H, W, COUT), (0, 3, 1, 2))


# ----------------------------------------------------------------------------
# Model.forward equivalent.
# ----------------------------------------------------------------------------
def model_forward(x, weight, bias, clamp_min_val=-6.0, clamp_max_val=-6.0):
    B, _, H, W = x.shape
    if clamp_min_val >= clamp_max_val:
        # max(conv, min) >= min >= max, then min(., max) == max everywhere; this path
        # is purely HBM-store bound, so a plain XLA broadcast is optimal.
        return jnp.full((B, COUT, H, W), clamp_max_val, jnp.float32)
    return conv_clamp(x, weight, bias, clamp_min_val, clamp_max_val)


if __name__ == "__main__":
    key = jax.random.PRNGKey(0)
    kx, kw_, kb = jax.random.split(key, 3)

    B, H, W = 2, 16, 16
    x = jax.random.normal(kx, (B, CIN, H, W), dtype=jnp.float32)

    fan_in = CIN * KH * KW
    bound = 1.0 / (fan_in ** 0.5)
    weight = jax.random.uniform(kw_, (COUT, CIN, KH, KW),
                                minval=-bound, maxval=bound, dtype=jnp.float32)
    bias = jax.random.uniform(kb, (COUT,),
                              minval=-bound, maxval=bound, dtype=jnp.float32)

    def reference(x, weight, bias, cmin, cmax):
        r = jax.lax.conv_general_dilated(
            x, weight, window_strides=(1, 1), padding=((PAD, PAD), (PAD, PAD)),
            dimension_numbers=("NCHW", "OIHW", "NCHW"))
        r = r + bias[None, :, None, None]
        return jnp.minimum(jnp.maximum(r, cmin), cmax)

    # Path 1: module defaults (min = max = -6) -> constant fast path.
    out_default = jax.block_until_ready(model_forward(x, weight, bias, -6.0, -6.0))
    ref_default = reference(x, weight, bias, -6.0, -6.0)
    assert out_default.shape == (B, COUT, H, W)
    assert jnp.allclose(out_default, ref_default, atol=1e-6), \
        float(jnp.max(jnp.abs(out_default - ref_default)))

    # Path 2: exercise the general banded-conv + clamp Pallas kernel.
    out_general = jax.block_until_ready(model_forward(x, weight, bias, -6.0, 6.0))
    ref_general = reference(x, weight, bias, -6.0, 6.0)
    assert out_general.shape == (B, COUT, H, W)
    assert jnp.allclose(out_general, ref_general, atol=1e-3), \
        float(jnp.max(jnp.abs(out_general - ref_general)))

    print("KERNEL_OK")
</pallas_src>

<mosaic_0001>
module attributes {stable_mosaic.version = 11 : i64} {
  func.func @_conv_clamp_kernel(%arg0: i32, %arg1: memref<1x4x16x16xf32, #tpu.memory_space<vmem>>, %arg2: memref<5x128x512xf32, #tpu.memory_space<vmem>>, %arg3: memref<1x512xf32, #tpu.memory_space<vmem>>, %arg4: memref<1x16x512xf32, #tpu.memory_space<vmem>>, %arg5: memref<20x128xf32, #tpu.memory_space<vmem>>) attributes {dimension_semantics = [#tpu.dimension_semantics<parallel>], iteration_bounds = array<i64: 2>, scalar_prefetch = 0 : i64, scratch_operands = 1 : i64, tpu.core_type = #tpu.core_type<tc>, window_params = [{transform_indices = @transform_0, window_bounds = array<i64: 1, 4, 16, 16>}, {pipeline_mode = #tpu.pipeline_mode<synchronous>, transform_indices = @transform_1, window_bounds = array<i64: 5, 128, 512>}, {pipeline_mode = #tpu.pipeline_mode<synchronous>, transform_indices = @transform_2, window_bounds = array<i64: 1, 512>}, {transform_indices = @transform_3, window_bounds = array<i64: 1, 16, 512>}]} {
    %cst = arith.constant 0.000000e+00 : f32
    %0 = vector.broadcast %cst : f32 to vector<20x128xf32>
    %c0 = arith.constant 0 : index
    %c0_0 = arith.constant 0 : index
    %1 = vector.load %arg5[%c0, %c0_0] : memref<20x128xf32, #tpu.memory_space<vmem>>, vector<20x128xf32>
    tpu.vector_store %arg5[%c0, %c0_0], %0 {strides = array<i32>} : memref<20x128xf32, #tpu.memory_space<vmem>>, vector<20x128xf32>,
    %c0_1 = arith.constant 0 : index
    %c0_2 = arith.constant 0 : index
    %c0_3 = arith.constant 0 : index
    %c0_4 = arith.constant 0 : index
    %2 = vector.load %arg1[%c0_1, %c0_2, %c0_3, %c0_4] : memref<1x4x16x16xf32, #tpu.memory_space<vmem>>, vector<1x1x16x16xf32>
    %3 = vector.shape_cast %2 : vector<1x1x16x16xf32> to vector<16x16xf32>
    %c2 = arith.constant 2 : index
    %c2_5 = arith.constant 2 : index
    %4 = vector.load %arg5[%c2, %c2_5] : memref<20x128xf32, #tpu.memory_space<vmem>>, vector<16x16xf32>
    tpu.vector_store %arg5[%c2, %c2_5], %3 {strides = array<i32>} : memref<20x128xf32, #tpu.memory_space<vmem>>, vector<16x16xf32>,
    %c0_6 = arith.constant 0 : index
    %c1 = arith.constant 1 : index
    %c0_7 = arith.constant 0 : index
    %c0_8 = arith.constant 0 : index
    %5 = vector.load %arg1[%c0_6, %c1, %c0_7, %c0_8] : memref<1x4x16x16xf32, #tpu.memory_space<vmem>>, vector<1x1x16x16xf32>
    %6 = vector.shape_cast %5 : vector<1x1x16x16xf32> to vector<16x16xf32>
    %c2_9 = arith.constant 2 : index
    %c22 = arith.constant 22 : index
    %7 = vector.load %arg5[%c2_9, %c22] : memref<20x128xf32, #tpu.memory_space<vmem>>, vector<16x16xf32>
    tpu.vector_store %arg5[%c2_9, %c22], %6 {strides = array<i32>} : memref<20x128xf32, #tpu.memory_space<vmem>>, vector<16x16xf32>,
    %c0_10 = arith.constant 0 : index
    %c2_11 = arith.constant 2 : index
    %c0_12 = arith.constant 0 : index
    %c0_13 = arith.constant 0 : index
    %8 = vector.load %arg1[%c0_10, %c2_11, %c0_12, %c0_13] : memref<1x4x16x16xf32, #tpu.memory_space<vmem>>, vector<1x1x16x16xf32>
    %9 = vector.shape_cast %8 : vector<1x1x16x16xf32> to vector<16x16xf32>
    %c2_14 = arith.constant 2 : index
    %c42 = arith.constant 42 : index
    %10 = vector.load %arg5[%c2_14, %c42] : memref<20x128xf32, #tpu.memory_space<vmem>>, vector<16x16xf32>
    tpu.vector_store %arg5[%c2_14, %c42], %9 {strides = array<i32>} : memref<20x128xf32, #tpu.memory_space<vmem>>, vector<16x16xf32>,
    %c0_15 = arith.constant 0 : index
    %c3 = arith.constant 3 : index
    %c0_16 = arith.constant 0 : index
    %c0_17 = arith.constant 0 : index
    %11 = vector.load %arg1[%c0_15, %c3, %c0_16, %c0_17] : memref<1x4x16x16xf32, #tpu.memory_space<vmem>>, vector<1x1x16x16xf32>
    %12 = vector.shape_cast %11 : vector<1x1x16x16xf32> to vector<16x16xf32>
    %c2_18 = arith.constant 2 : index
    %c62 = arith.constant 62 : index
    %13 = vector.load %arg5[%c2_18, %c62] : memref<20x128xf32, #tpu.memory_space<vmem>>, vector<16x16xf32>
    tpu.vector_store %arg5[%c2_18, %c62], %12 {strides = array<i32>} : memref<20x128xf32, #tpu.memory_space<vmem>>, vector<16x16xf32>,
    %cst_19 = arith.constant 0.000000e+00 : f32
    %14 = vector.broadcast %cst_19 : f32 to vector<16x512xf32>
    %c0_20 = arith.constant 0 : index
    %c0_21 = arith.constant 0 : index
    %15 = vector.load %arg5[%c0_20, %c0_21] : memref<20x128xf32, #tpu.memory_space<vmem>>, vector<16x128xf32>
    %c0_22 = arith.constant 0 : index
    %c0_23 = arith.constant 0 : index
    %c0_24 = arith.constant 0 : index
    %16 = vector.load %arg2[%c0_22, %c0_23, %c0_24] : memref<5x128x512xf32, #tpu.memory_space<vmem>>, vector<1x128x512xf32>
    %17 = vector.shape_cast %16 : vector<1x128x512xf32> to vector<128x512xf32>
    %cst_25 = arith.constant dense<0.000000e+00> : vector<16x512xf32>
    %18 = tpu.matmul %15, %17, %cst_25 {dimension_numbers = #tpu.dot_dimension_numbers<[1], [0], [0], [1], [0, 0, 1, 1], [], []>} : vector<16x128xf32>, vector<128x512xf32>, vector<16x512xf32> -> vector<16x512xf32>
    %19 = arith.addf %14, %18 : vector<16x512xf32>
    %c1_26 = arith.constant 1 : index
    %c0_27 = arith.constant 0 : index
    %20 = vector.load %arg5[%c1_26, %c0_27] : memref<20x128xf32, #tpu.memory_space<vmem>>, vector<16x128xf32>
    %c1_28 = arith.constant 1 : index
    %c0_29 = arith.constant 0 : index
    %c0_30 = arith.constant 0 : index
    %21 = vector.load %arg2[%c1_28, %c0_29, %c0_30] : memref<5x128x512xf32, #tpu.memory_space<vmem>>, vector<1x128x512xf32>
    %22 = vector.shape_cast %21 : vector<1x128x512xf32> to vector<128x512xf32>
    %cst_31 = arith.constant dense<0.000000e+00> : vector<16x512xf32>
    %23 = tpu.matmul %20, %22, %cst_31 {dimension_numbers = #tpu.dot_dimension_numbers<[1], [0], [0], [1], [0, 0, 1, 1], [], []>} : vector<16x128xf32>, vector<128x512xf32>, vector<16x512xf32> -> vector<16x512xf32>
    %24 = arith.addf %19, %23 : vector<16x512xf32>
    %c2_32 = arith.constant 2 : index
    %c0_33 = arith.constant 0 : index
    %25 = vector.load %arg5[%c2_32, %c0_33] : memref<20x128xf32, #tpu.memory_space<vmem>>, vector<16x128xf32>
    %c2_34 = arith.constant 2 : index
    %c0_35 = arith.constant 0 : index
    %c0_36 = arith.constant 0 : index
    %26 = vector.load %arg2[%c2_34, %c0_35, %c0_36] : memref<5x128x512xf32, #tpu.memory_space<vmem>>, vector<1x128x512xf32>
    %27 = vector.shape_cast %26 : vector<1x128x512xf32> to vector<128x512xf32>
    %cst_37 = arith.constant dense<0.000000e+00> : vector<16x512xf32>
    %28 = tpu.matmul %25, %27, %cst_37 {dimension_numbers = #tpu.dot_dimension_numbers<[1], [0], [0], [1], [0, 0, 1, 1], [], []>} : vector<16x128xf32>, vector<128x512xf32>, vector<16x512xf32> -> vector<16x512xf32>
    %29 = arith.addf %24, %28 : vector<16x512xf32>
    %c3_38 = arith.constant 3 : index
    %c0_39 = arith.constant 0 : index
    %30 = vector.load %arg5[%c3_38, %c0_39] : memref<20x128xf32, #tpu.memory_space<vmem>>, vector<16x128xf32>
    %c3_40 = arith.constant 3 : index
    %c0_41 = arith.constant 0 : index
    %c0_42 = arith.constant 0 : index
    %31 = vector.load %arg2[%c3_40, %c0_41, %c0_42] : memref<5x128x512xf32, #tpu.memory_space<vmem>>, vector<1x128x512xf32>
    %32 = vector.shape_cast %31 : vector<1x128x512xf32> to vector<128x512xf32>
    %cst_43 = arith.constant dense<0.000000e+00> : vector<16x512xf32>
    %33 = tpu.matmul %30, %32, %cst_43 {dimension_numbers = #tpu.dot_dimension_numbers<[1], [0], [0], [1], [0, 0, 1, 1], [], []>} : vector<16x128xf32>, vector<128x512xf32>, vector<16x512xf32> -> vector<16x512xf32>
    %34 = arith.addf %29, %33 : vector<16x512xf32>
    %c4 = arith.constant 4 : index
    %c0_44 = arith.constant 0 : index
    %35 = vector.load %arg5[%c4, %c0_44] : memref<20x128xf32, #tpu.memory_space<vmem>>, vector<16x128xf32>
    %c4_45 = arith.constant 4 : index
    %c0_46 = arith.constant 0 : index
    %c0_47 = arith.constant 0 : index
    %36 = vector.load %arg2[%c4_45, %c0_46, %c0_47] : memref<5x128x512xf32, #tpu.memory_space<vmem>>, vector<1x128x512xf32>
    %37 = vector.shape_cast %36 : vector<1x128x512xf32> to vector<128x512xf32>
    %cst_48 = arith.constant dense<0.000000e+00> : vector<16x512xf32>
    %38 = tpu.matmul %35, %37, %cst_48 {dimension_numbers = #tpu.dot_dimension_numbers<[1], [0], [0], [1], [0, 0, 1, 1], [], []>} : vector<16x128xf32>, vector<128x512xf32>, vector<16x512xf32> -> vector<16x512xf32>
    %39 = arith.addf %34, %38 : vector<16x512xf32>
    %c0_49 = arith.constant 0 : index
    %c0_50 = arith.constant 0 : index
    %40 = vector.load %arg3[%c0_49, %c0_50] : memref<1x512xf32, #tpu.memory_space<vmem>>, vector<1x512xf32>
    %41 = vector.broadcast %40 : vector<1x512xf32> to vector<16x512xf32>
    %42 = arith.addf %39, %41 : vector<16x512xf32>
    %cst_51 = arith.constant -6.000000e+00 : f32
    %43 = vector.broadcast %cst_51 : f32 to vector<16x512xf32>
    %44 = arith.maximumf %42, %43 : vector<16x512xf32>
    %cst_52 = arith.constant 6.000000e+00 : f32
    %45 = vector.broadcast %cst_52 : f32 to vector<16x512xf32>
    %46 = arith.minimumf %44, %45 : vector<16x512xf32>
    %47 = vector.shape_cast %46 : vector<16x512xf32> to vector<1x16x512xf32>
    %c0_53 = arith.constant 0 : index
    %c0_54 = arith.constant 0 : index
    %c0_55 = arith.constant 0 : index
    %48 = vector.load %arg4[%c0_53, %c0_54, %c0_55] : memref<1x16x512xf32, #tpu.memory_space<vmem>>, vector<1x16x512xf32>
    tpu.vector_store %arg4[%c0_53, %c0_54, %c0_55], %47 {strides = array<i32>} : memref<1x16x512xf32, #tpu.memory_space<vmem>>, vector<1x16x512xf32>,
    return
  }
  func.func @transform_0(%arg0: i32) -> (i32, i32, i32, i32) {
    %c0_i32 = arith.constant 0 : i32
    %c0_i32_0 = arith.constant 0 : i32
    %c0_i32_1 = arith.constant 0 : i32
    %c0_i32_2 = arith.constant 0 : i32
    return %arg0, %c0_i32, %c0_i32_0, %c0_i32_1 : i32, i32, i32, i32
  }
  func.func @transform_1(%arg0: i32) -> (i32, i32, i32) {
    %c0_i32 = arith.constant 0 : i32
    %c0_i32_0 = arith.constant 0 : i32
    %c0_i32_1 = arith.constant 0 : i32
    %c0_i32_2 = arith.constant 0 : i32
    return %c0_i32, %c0_i32_0, %c0_i32_1 : i32, i32, i32
  }
  func.func @transform_2(%arg0: i32) -> (i32, i32) {
    %c0_i32 = arith.constant 0 : i32
    %c0_i32_0 = arith.constant 0 : i32
    %c0_i32_1 = arith.constant 0 : i32
    return %c0_i32, %c0_i32_0 : i32, i32
  }
  func.func @transform_3(%arg0: i32) -> (i32, i32, i32) {
    %c0_i32 = arith.constant 0 : i32
    %c0_i32_0 = arith.constant 0 : i32
    %c0_i32_1 = arith.constant 0 : i32
    return %arg0, %c0_i32, %c0_i32_0 : i32, i32, i32
  }
}

</mosaic_0001>

<llo_original>
// kernel: tpu_custom_call.1
$region0: #{tpu_custom_call.1}
  #allocation0 [shape = 'u32[]', space=smem, size = 0x4, offset = 0x4, fixed_abs, tag = 'smem constant byte address 0x4 - core index']
  #allocation1 [shape = 'u32[72,128]{1,0:T(1,128)}', space=vmem, size = 0x9000, scoped, tag = 'internal scratch']
  #allocation2 [shape = 'f32[20,128]{1,0:T(8,128)}', space=vmem, size = 0x3000, scoped, tag = 'scratch operand']
  %s0 = inlined_call_operand.hbm [shape: f32[2,4,16,16], index: 0, kind: input, shape index: {}]
  %s1 = inlined_call_operand.hbm [shape: f32[5,128,512], index: 1, kind: input, shape index: {}]
  %s2 = inlined_call_operand.hbm [shape: f32[1,512], index: 2, kind: input, shape index: {}]
  %s3 = inlined_call_operand.hbm [shape: f32[2,16,512], index: 3, kind: output, shape index: {}]
  %s4 = sld [smem:[#allocation0]]
  $region57: #{tpu_custom_call.1} parent=0
    _
  %s6 = ssub.s32 1, %s4
  %s7 = scalar_select 0, %s6, %s4
  $region1: #{tpu_custom_call.1} parent=0
    #allocation3 [shape = 'u8[65536]{0}', space=vmem, size = 0x10000, scoped, tag = 'input window, operand 0']
    #allocation4 [shape = 's32[2]{0}', space=sflag, size = 0x8, scoped, tag = 'scoped memory for tpu_custom_call.1']
    #allocation5 [shape = 's32[2]{0}', space=sflag, size = 0x8, scoped, tag = 'scoped memory for tpu_custom_call.1']
    #allocation6 [shape = 'u8[1310720]{0}', space=vmem, size = 0x140000, scoped, tag = 'input window, operand 1, single buffered']
    #allocation7 [shape = 's32[1]{0}', space=sflag, size = 0x4, scoped, tag = 'scoped memory for tpu_custom_call.1']
    #allocation8 [shape = 'u8[2048]{0}', space=vmem, size = 0x800, scoped, tag = 'input window, operand 2, single buffered']
    #allocation9 [shape = 'u8[65536]{0}', space=vmem, size = 0x10000, scoped, tag = 'output window, operand 0']
    %8 = vsyncpa [#allocation4], 0
    %s9 = scalar_lea.sflag [#allocation4], 1
    %10 = vsyncpa %s9, 0
    %11 = vsyncpa [#allocation7], 0
    %12 = vsyncpa [#allocation5], 0
    %s13 = scalar_lea.sflag [#allocation5], 1
    %14 = vsyncpa %s13, 0
    loop: start=0, step=1, limit=4
    $region2: #{tpu_custom_call.1} parent=1 // loop_pre_header
      _
    $region3: #{tpu_custom_call.1} parent=1 // loop_header
      %s16 = sphi 0, %s20
      %p17 = scmp.ge.s32.totalorder %s16, 4
      %s26 = sphi 0, %s28
      %s29 = sphi 0, %s26
      %s30 = sphi 0, %s29
      %s46 = sphi 0, %s30
      %s50 = sphi 0, %s50
      %s52 = sphi 0, %s50
      %s53 = sphi 0, %s52
      %s67 = sphi 0, %s53
      %s71 = sphi 0, %s71
      %s73 = sphi 0, %s71
      %s74 = sphi 0, %s73
      %s88 = sphi 0, %s74
      %s94 = sphi 0, %s96
      %s97 = sphi 0, %s94
      %s98 = sphi 0, %s97
      %s114 = sphi 0, %s98
    $region4: #{tpu_custom_call.1} parent=1 // loop_header_branch
      %19 = sbr.rel (%p17) target = $region8
    $region5: #{tpu_custom_call.1} parent=1 // loop_body
      %s21 = ssub.s32 %s16, 1
      %s22 = ssub.s32 %s16, 2
      %s23 = sadd.s32 %s16, 1
      %s24 = ssub.s32 %s16, %s23
      %p25 = scmp.eq.s32.totalorder %s24, 0
      %s27 = sadd.s32 %s26, 1
      %s28 = scalar_select %p25, %s26, %s27
      %p31 = pneg %p25
      %p32 = scmp.eq.s32.totalorder %s16, 1
      %p33 = por %p31, %p32
      %p34 = scmp.ne.s32.totalorder %s26, %s29
      %p35 = scmp.eq.s32.totalorder %s16, 0
      %p36 = por %p34, %p35
      %p37 = scmp.ne.s32.totalorder %s26, %s29
      %p38 = scmp.eq.s32.totalorder %s21, 1
      %p39 = por %p37, %p38
      %p40 = scmp.ne.s32.totalorder %s29, %s30
      %p41 = scmp.eq.s32.totalorder %s21, 0
      %p42 = por %p40, %p41
      %p43 = scmp.ne.s32.totalorder %s29, %s30
      %p44 = scmp.eq.s32.totalorder %s22, 1
      %p45 = por %p43, %p44
      %p47 = scmp.ne.s32.totalorder %s30, %s46
      %p48 = scmp.eq.s32.totalorder %s22, 0
      %p49 = por %p47, %p48
      %s51 = sadd.s32 %s50, 1
      %p54 = scmp.eq.s32.totalorder %s16, 1
      %p55 = scmp.ne.s32.totalorder %s50, %s52
      %p56 = scmp.eq.s32.totalorder %s16, 0
      %p57 = por %p55, %p56
      %p58 = scmp.ne.s32.totalorder %s50, %s52
      %p59 = scmp.eq.s32.totalorder %s21, 1
      %p60 = por %p58, %p59
      %p61 = scmp.ne.s32.totalorder %s52, %s53
      %p62 = scmp.eq.s32.totalorder %s21, 0
      %p63 = por %p61, %p62
      %p64 = scmp.ne.s32.totalorder %s52, %s53
      %p65 = scmp.eq.s32.totalorder %s22, 1
      %p66 = por %p64, %p65
      %p68 = scmp.ne.s32.totalorder %s53, %s67
      %p69 = scmp.eq.s32.totalorder %s22, 0
      %p70 = por %p68, %p69
      %s72 = sadd.s32 %s71, 1
      %p75 = scmp.eq.s32.totalorder %s16, 1
      %p76 = scmp.ne.s32.totalorder %s71, %s73
      %p77 = scmp.eq.s32.totalorder %s16, 0
      %p78 = por %p76, %p77
      %p79 = scmp.ne.s32.totalorder %s71, %s73
      %p80 = scmp.eq.s32.totalorder %s21, 1
      %p81 = por %p79, %p80
      %p82 = scmp.ne.s32.totalorder %s73, %s74
      %p83 = scmp.eq.s32.totalorder %s21, 0
      %p84 = por %p82, %p83
      %p85 = scmp.ne.s32.totalorder %s73, %s74
      %p86 = scmp.eq.s32.totalorder %s22, 1
      %p87 = por %p85, %p86
      %p89 = scmp.ne.s32.totalorder %s74, %s88
      %p90 = scmp.eq.s32.totalorder %s22, 0
      %p91 = por %p89, %p90
      %s92 = ssub.s32 %s16, %s23
      %p93 = scmp.eq.s32.totalorder %s92, 0
      %s95 = sadd.s32 %s94, 1
      %s96 = scalar_select %p93, %s94, %s95
      %p99 = pneg %p93
      %p100 = scmp.eq.s32.totalorder %s16, 1
      %p101 = por %p99, %p100
      %p102 = scmp.ne.s32.totalorder %s94, %s97
      %p103 = scmp.eq.s32.totalorder %s16, 0
      %p104 = por %p102, %p103
      %p105 = scmp.ne.s32.totalorder %s94, %s97
      %p106 = scmp.eq.s32.totalorder %s21, 1
      %p107 = por %p105, %p106
      %p108 = scmp.ne.s32.totalorder %s97, %s98
      %p109 = scmp.eq.s32.totalorder %s21, 0
      %p110 = por %p108, %p109
      %p111 = scmp.ne.s32.totalorder %s97, %s98
      %p112 = scmp.eq.s32.totalorder %s22, 1
      %p113 = por %p111, %p112
      %p115 = scmp.ne.s32.totalorder %s98, %s114
      %p116 = scmp.eq.s32.totalorder %s22, 0
      %p117 = por %p115, %p116
      %p118 = scmp.le.s32.totalorder 1, %s16
      %p119 = scmp.lt.s32.totalorder %s16, 3
      %p120 = pnand %p118, %p119
      %p121 = pneg %p120
      // Predicated region
      $region9: #{tpu_custom_call.1} parent=5 // pred_check
        _
      $region10: #{tpu_custom_call.1} parent=5 // pred_check_branch
        %123 = sbr.rel (%p120) target = $region12
      $region11: #{tpu_custom_call.1} parent=5 // pred_region
        %s124 = ssub.s32 %s16, 1
        // Predicated region
        $region13: #{tpu_custom_call.1} parent=11 // pred_check
          %p125 = pneg %p63
        $region14: #{tpu_custom_call.1} parent=11 // pred_check_branch
          %127 = sbr.rel (%p125) target = $region16
        $region15: #{tpu_custom_call.1} parent=11 // pred_region
          %129 = vsyncadd [#allocation7], 0
          %s130 = sshll.u32 %s1, 4
          %s131 = int_to_ptr.hbm [resolvable:$true] %s130
          %s132 = sshll.u32 [#allocation6], 4
          %s133 = int_to_ptr.vmem [resolvable:$true] %s132
          %138 = dma.hbm_to_vmem [thread:$0]  %s131, 40960, %s133, [#allocation7], 512, 512, 32
        $region16: #{tpu_custom_call.1} parent=11 // pred_fallthru
          _
        // Predicated region
        $region17: #{tpu_custom_call.1} parent=11 // pred_check
          %p139 = pneg %p84
        $region18: #{tpu_custom_call.1} parent=11 // pred_check_branch
          %141 = sbr.rel (%p139) target = $region20
        $region19: #{tpu_custom_call.1} parent=11 // pred_region
          %143 = vsyncadd [#allocation7], 0
          %s145 = sshll.u32 %s2, 4
          %s146 = int_to_ptr.hbm [resolvable:$true] %s145
          %s147 = sshll.u32 [#allocation8], 4
          %s148 = int_to_ptr.vmem [resolvable:$true] %s147
          %150 = dma.hbm_to_vmem [thread:$0]  %s146, 64, %s148, [#allocation7]
        $region20: #{tpu_custom_call.1} parent=11 // pred_fallthru
          _
      $region12: #{tpu_custom_call.1} parent=5 // pred_fallthru
        _
      %p151 = scmp.lt.s32.totalorder %s16, 2
      // Predicated region
      $region21: #{tpu_custom_call.1} parent=5 // pred_check
        %p152 = pneg %p151
      $region22: #{tpu_custom_call.1} parent=5 // pred_check_branch
        %154 = sbr.rel (%p152) target = $region24
      $region23: #{tpu_custom_call.1} parent=5 // pred_region
        // Predicated region
        $region25: #{tpu_custom_call.1} parent=23 // pred_check
          %p155 = pneg %p36
        $region26: #{tpu_custom_call.1} parent=23 // pred_check_branch
          %157 = sbr.rel (%p155) target = $region28
        $region27: #{tpu_custom_call.1} parent=23 // pred_region
          %s158 = sand.u32 %s26, 1
          %s159 = scalar_lea.sflag [#allocation4], %s158
          %s160 = sand.u32 %s26, 1
          %s161 = smul.addr %s160, 64
          %s162 = scalar_lea.vmem [#allocation3], %s161
          %164 = vsyncadd %s159, 0
          %s165 = smul.addr %s16, 8
          %s166 = smul.addr %s165, 8
          %s167 = scalar_lea.hbm %s0, %s166
          %s168 = sshll.u32 %s167, 4
          %s169 = int_to_ptr.hbm [resolvable:$true] %s168
          %s170 = sshll.u32 %s162, 4
          %s171 = int_to_ptr.vmem [resolvable:$true] %s170
          %176 = dma.hbm_to_vmem [thread:$0]  %s169, 1024, %s171, %s159, 128, 128, 8
        $region28: #{tpu_custom_call.1} parent=23 // pred_fallthru
          _
      $region24: #{tpu_custom_call.1} parent=5 // pred_fallthru
        _
      %p177 = scmp.le.s32.totalorder 1, %s16
      %p178 = scmp.lt.s32.totalorder %s16, 3
      %p179 = pnand %p177, %p178
      %p180 = pneg %p179
      // Predicated region
      $region29: #{tpu_custom_call.1} parent=5 // pred_check
        _
      $region30: #{tpu_custom_call.1} parent=5 // pred_check_branch
        %182 = sbr.rel (%p179) target = $region32
      $region31: #{tpu_custom_call.1} parent=5 // pred_region
        %s183 = ssub.s32 %s16, 1
        %s184 = sand.u32 %s29, 1
        %s185 = scalar_lea.sflag [#allocation4], %s184
        %s186 = sand.u32 %s29, 1
        %s187 = smul.addr %s186, 64
        %s188 = scalar_lea.vmem [#allocation3], %s187
        // Predicated region
        $region33: #{tpu_custom_call.1} parent=31 // pred_check
          %p189 = pneg %p42
        $region34: #{tpu_custom_call.1} parent=31 // pred_check_branch
          %191 = sbr.rel (%p189) target = $region36
        $region35: #{tpu_custom_call.1} parent=31 // pred_region
          %193 = dma.done %s185, 1024
        $region36: #{tpu_custom_call.1} parent=31 // pred_fallthru
          _
        // Predicated region
        $region37: #{tpu_custom_call.1} parent=31 // pred_check
          %p194 = pneg %p63
        $region38: #{tpu_custom_call.1} parent=31 // pred_check_branch
          %196 = sbr.rel (%p194) target = $region40
        $region39: #{tpu_custom_call.1} parent=31 // pred_region
          %198 = dma.done [#allocation7], 40960
        $region40: #{tpu_custom_call.1} parent=31 // pred_fallthru
          _
        // Predicated region
        $region41: #{tpu_custom_call.1} parent=31 // pred_check
          %p199 = pneg %p84
        $region42: #{tpu_custom_call.1} parent=31 // pred_check_branch
          %201 = sbr.rel (%p199) target = $region44
        $region43: #{tpu_custom_call.1} parent=31 // pred_region
          %203 = dma.done [#allocation7], 64
        $region44: #{tpu_custom_call.1} parent=31 // pred_fallthru
          _
        %s204 = sand.u32 %s29, 1
        %s205 = scalar_lea.sflag [#allocation4], %s204
        %s206 = sand.u32 %s29, 1
        %s207 = smul.addr %s206, 64
        %s208 = scalar_lea.vmem [#allocation3], %s207
        %p209 = pneg %p42
        %p210 = pneg %p39
        %p211 = pneg %p63
        %p212 = pneg %p60
        %p213 = pneg %p84
        %p214 = pneg %p81
        %p215 = pneg %p110
        %p216 = pneg %p107
        %s217 = sand.u32 %s97, 1
        %s218 = scalar_lea.sflag [#allocation5], %s217
        %s219 = sand.u32 %s97, 1
        %s220 = smul.addr %s219, 64
        %s221 = scalar_lea.vmem [#allocation9], %s220
        %222 = vst [vmem:[#allocation2] sm:$0xff] 0.0
        %223 = vst [vmem:[#allocation2 + $0x8] sm:$0xff] 0.0
        %224 = vst [vmem:[#allocation2 + $0x10] sm:$0xf] 0.0
        %v225 = vld [vmem:[%s188] sm:$0xff]
        %v226 = vld [vmem:[%s188 + $0x8] sm:$0xff]
        %229 = vrot.lane.b32.xlu0 %v225, 2
        %v230 = vpop.permute.xlu0 %229
        %231 = vrot.lane.b32.xlu0 %v226, 2
        %v232 = vpop.permute.xlu0 %231
        %vm235 = vcmask 146448
        %236 = vst.msk [vmem:[#allocation2 + $0x2] sm:$0xff] %vm235, %v230
        %237 = vst.msk [vmem:[#allocation2 + $0xa] sm:$0xff] %vm235, %v232
        %s238 = scalar_lea.vmem %s188, 16 [#allocation3]
        %v239 = vld [vmem:[%s238] sm:$0xff]
        %v240 = vld [vmem:[%s238 + $0x8] sm:$0xff]
        %243 = vrot.lane.b32.xlu0 %v239, 22
        %v244 = vpop.permute.xlu0 %243
        %245 = vrot.lane.b32.xlu0 %v240, 22
        %v246 = vpop.permute.xlu0 %245
        %vm249 = vcmask 310448
        %250 = vst.msk [vmem:[#allocation2 + $0x2] sm:$0xff] %vm249, %v244
        %251 = vst.msk [vmem:[#allocation2 + $0xa] sm:$0xff] %vm249, %v246
        %s252 = scalar_lea.vmem %s188, 32 [#allocation3]
        %v253 = vld [vmem:[%s252] sm:$0xff]
        %v254 = vld [vmem:[%s252 + $0x8] sm:$0xff]
        %257 = vrot.lane.b32.xlu0 %v253, 42
        %v258 = vpop.permute.xlu0 %257
        %259 = vrot.lane.b32.xlu0 %v254, 42
        %v260 = vpop.permute.xlu0 %259
        %vm263 = vcmask 474448
        %264 = vst.msk [vmem:[#allocation2 + $0x2] sm:$0xff] %vm263, %v258
        %265 = vst.msk [vmem:[#allocation2 + $0xa] sm:$0xff] %vm263, %v260
        %s266 = scalar_lea.vmem %s188, 48 [#allocation3]
        %v267 = vld [vmem:[%s266] sm:$0xff]
        %v268 = vld [vmem:[%s266 + $0x8] sm:$0xff]
        %271 = vrot.lane.b32.xlu0 %v267, 62
        %v272 = vpop.permute.xlu0 %271
        %273 = vrot.lane.b32.xlu0 %v268, 62
        %v274 = vpop.permute.xlu0 %273
        %vm277 = vcmask 638448
        %278 = vst.msk [vmem:[#allocation2 + $0x2] sm:$0xff] %vm277, %v272
        %279 = vst.msk [vmem:[#allocation2 + $0xa] sm:$0xff] %vm277, %v274
        %v280 = vld [vmem:[#allocation2] sm:$0xff]
        %v281 = vld [vmem:[#allocation2 + $0x8] sm:$0xff]
        %v282 = vld [vmem:[#allocation6] sm:$0xff]
        %v283 = vld [vmem:[#allocation6 + $0x8] sm:$0xff]
        %v284 = vld [vmem:[#allocation6 + $0x10] sm:$0xff]
        %v285 = vld [vmem:[#allocation6 + $0x18] sm:$0xff]
        %v286 = vld [vmem:[#allocation6 + $0x20] sm:$0xff]
        %v287 = vld [vmem:[#allocation6 + $0x28] sm:$0xff]
        %v288 = vld [vmem:[#allocation6 + $0x30] sm:$0xff]
        %v289 = vld [vmem:[#allocation6 + $0x38] sm:$0xff]
        %v290 = vld [vmem:[#allocation6 + $0x40] sm:$0xff]
        %v291 = vld [vmem:[#allocation6 + $0x48] sm:$0xff]
        %v292 = vld [vmem:[#allocation6 + $0x50] sm:$0xff]
        %v293 = vld [vmem:[#allocation6 + $0x58] sm:$0xff]
        %v294 = vld [vmem:[#allocation6 + $0x60] sm:$0xff]
        %v295 = vld [vmem:[#allocation6 + $0x68] sm:$0xff]
        %v296 = vld [vmem:[#allocation6 + $0x70] sm:$0xff]
        %v297 = vld [vmem:[#allocation6 + $0x78] sm:$0xff]
        %v298 = vld [vmem:[#allocation6 + $0x80] sm:$0xff]
        %v299 = vld [vmem:[#allocation6 + $0x88] sm:$0xff]
        %v300 = vld [vmem:[#allocation6 + $0x90] sm:$0xff]
        %v301 = vld [vmem:[#allocation6 + $0x98] sm:$0xff]
        %v302 = vld [vmem:[#allocation6 + $0xa0] sm:$0xff]
        %v303 = vld [vmem:[#allocation6 + $0xa8] sm:$0xff]
        %v304 = vld [vmem:[#allocation6 + $0xb0] sm:$0xff]
        %v305 = vld [vmem:[#allocation6 + $0xb8] sm:$0xff]
        %v306 = vld [vmem:[#allocation6 + $0xc0] sm:$0xff]
        %v307 = vld [vmem:[#allocation6 + $0xc8] sm:$0xff]
        %v308 = vld [vmem:[#allocation6 + $0xd0] sm:$0xff]
        %v309 = vld [vmem:[#allocation6 + $0xd8] sm:$0xff]
        %v310 = vld [vmem:[#allocation6 + $0xe0] sm:$0xff]
        %v311 = vld [vmem:[#allocation6 + $0xe8] sm:$0xff]
        %v312 = vld [vmem:[#allocation6 + $0xf0] sm:$0xff]
        %v313 = vld [vmem:[#allocation6 + $0xf8] sm:$0xff]
        %v314 = vld [vmem:[#allocation6 + $0x100] sm:$0xff]
        %v315 = vld [vmem:[#allocation6 + $0x108] sm:$0xff]
        %v316 = vld [vmem:[#allocation6 + $0x110] sm:$0xff]
        %v317 = vld [vmem:[#allocation6 + $0x118] sm:$0xff]
        %v318 = vld [vmem:[#allocation6 + $0x120] sm:$0xff]
        %v319 = vld [vmem:[#allocation6 + $0x128] sm:$0xff]
        %v320 = vld [vmem:[#allocation6 + $0x130] sm:$0xff]
        %v321 = vld [vmem:[#allocation6 + $0x138] sm:$0xff]
        %v322 = vld [vmem:[#allocation6 + $0x140] sm:$0xff]
        %v323 = vld [vmem:[#allocation6 + $0x148] sm:$0xff]
        %v324 = vld [vmem:[#allocation6 + $0x150] sm:$0xff]
        %v325 = vld [vmem:[#allocation6 + $0x158] sm:$0xff]
        %v326 = vld [vmem:[#allocation6 + $0x160] sm:$0xff]
        %v327 = vld [vmem:[#allocation6 + $0x168] sm:$0xff]
        %v328 = vld [vmem:[#allocation6 + $0x170] sm:$0xff]
        %v329 = vld [vmem:[#allocation6 + $0x178] sm:$0xff]
        %v330 = vld [vmem:[#allocation6 + $0x180] sm:$0xff]
        %v331 = vld [vmem:[#allocation6 + $0x188] sm:$0xff]
        %v332 = vld [vmem:[#allocation6 + $0x190] sm:$0xff]
        %v333 = vld [vmem:[#allocation6 + $0x198] sm:$0xff]
        %v334 = vld [vmem:[#allocation6 + $0x1a0] sm:$0xff]
        %v335 = vld [vmem:[#allocation6 + $0x1a8] sm:$0xff]
        %v336 = vld [vmem:[#allocation6 + $0x1b0] sm:$0xff]
        %v337 = vld [vmem:[#allocation6 + $0x1b8] sm:$0xff]
        %v338 = vld [vmem:[#allocation6 + $0x1c0] sm:$0xff]
        %v339 = vld [vmem:[#allocation6 + $0x1c8] sm:$0xff]
        %v340 = vld [vmem:[#allocation6 + $0x1d0] sm:$0xff]
        %v341 = vld [vmem:[#allocation6 + $0x1d8] sm:$0xff]
        %v342 = vld [vmem:[#allocation6 + $0x1e0] sm:$0xff]
        %v343 = vld [vmem:[#allocation6 + $0x1e8] sm:$0xff]
        %v344 = vld [vmem:[#allocation6 + $0x1f0] sm:$0xff]
        %v345 = vld [vmem:[#allocation6 + $0x1f8] sm:$0xff]
        %v346 = vld [vmem:[#allocation2 + $0x1] sm:$0xff]
        %v347 = vld [vmem:[#allocation2 + $0x9] sm:$0xff]
        %s348 = scalar_lea.vmem [#allocation6], 512
        %v349 = vld [vmem:[%s348] sm:$0xff]
        %v350 = vld [vmem:[%s348 + $0x8] sm:$0xff]
        %v351 = vld [vmem:[%s348 + $0x10] sm:$0xff]
        %v352 = vld [vmem:[%s348 + $0x18] sm:$0xff]
        %v353 = vld [vmem:[%s348 + $0x20] sm:$0xff]
        %v354 = vld [vmem:[%s348 + $0x28] sm:$0xff]
        %v355 = vld [vmem:[%s348 + $0x30] sm:$0xff]
        %v356 = vld [vmem:[%s348 + $0x38] sm:$0xff]
        %v357 = vld [vmem:[%s348 + $0x40] sm:$0xff]
        %v358 = vld [vmem:[%s348 + $0x48] sm:$0xff]
        %v359 = vld [vmem:[%s348 + $0x50] sm:$0xff]
        %v360 = vld [vmem:[%s348 + $0x58] sm:$0xff]
        %v361 = vld [vmem:[%s348 + $0x60] sm:$0xff]
        %v362 = vld [vmem:[%s348 + $0x68] sm:$0xff]
        %v363 = vld [vmem:[%s348 + $0x70] sm:$0xff]
        %v364 = vld [vmem:[%s348 + $0x78] sm:$0xff]
        %v365 = vld [vmem:[%s348 + $0x80] sm:$0xff]
        %v366 = vld [vmem:[%s348 + $0x88] sm:$0xff]
        %v367 = vld [vmem:[%s348 + $0x90] sm:$0xff]
        %v368 = vld [vmem:[%s348 + $0x98] sm:$0xff]
        %v369 = vld [vmem:[%s348 + $0xa0] sm:$0xff]
        %v370 = vld [vmem:[%s348 + $0xa8] sm:$0xff]
        %v371 = vld [vmem:[%s348 + $0xb0] sm:$0xff]
        %v372 = vld [vmem:[%s348 + $0xb8] sm:$0xff]
        %v373 = vld [vmem:[%s348 + $0xc0] sm:$0xff]
        %v374 = vld [vmem:[%s348 + $0xc8] sm:$0xff]
        %v375 = vld [vmem:[%s348 + $0xd0] sm:$0xff]
        %v376 = vld [vmem:[%s348 + $0xd8] sm:$0xff]
        %v377 = vld [vmem:[%s348 + $0xe0] sm:$0xff]
        %v378 = vld [vmem:[%s348 + $0xe8] sm:$0xff]
        %v379 = vld [vmem:[%s348 + $0xf0] sm:$0xff]
        %v380 = vld [vmem:[%s348 + $0xf8] sm:$0xff]
        %v381 = vld [vmem:[%s348 + $0x100] sm:$0xff]
        %v382 = vld [vmem:[%s348 + $0x108] sm:$0xff]
        %v383 = vld [vmem:[%s348 + $0x110] sm:$0xff]
        %v384 = vld [vmem:[%s348 + $0x118] sm:$0xff]
        %v385 = vld [vmem:[%s348 + $0x120] sm:$0xff]
        %v386 = vld [vmem:[%s348 + $0x128] sm:$0xff]
        %v387 = vld [vmem:[%s348 + $0x130] sm:$0xff]
        %v388 = vld [vmem:[%s348 + $0x138] sm:$0xff]
        %v389 = vld [vmem:[%s348 + $0x140] sm:$0xff]
        %v390 = vld [vmem:[%s348 + $0x148] sm:$0xff]
        %v391 = vld [vmem:[%s348 + $0x150] sm:$0xff]
        %v392 = vld [vmem:[%s348 + $0x158] sm:$0xff]
        %v393 = vld [vmem:[%s348 + $0x160] sm:$0xff]
        %v394 = vld [vmem:[%s348 + $0x168] sm:$0xff]
        %v395 = vld [vmem:[%s348 + $0x170] sm:$0xff]
        %v396 = vld [vmem:[%s348 + $0x178] sm:$0xff]
        %v397 = vld [vmem:[%s348 + $0x180] sm:$0xff]
        %v398 = vld [vmem:[%s348 + $0x188] sm:$0xff]
        %v399 = vld [vmem:[%s348 + $0x190] sm:$0xff]
        %v400 = vld [vmem:[%s348 + $0x198] sm:$0xff]
        %v401 = vld [vmem:[%s348 + $0x1a0] sm:$0xff]
        %v402 = vld [vmem:[%s348 + $0x1a8] sm:$0xff]
        %v403 = vld [vmem:[%s348 + $0x1b0] sm:$0xff]
        %v404 = vld [vmem:[%s348 + $0x1b8] sm:$0xff]
        %v405 = vld [vmem:[%s348 + $0x1c0] sm:$0xff]
        %v406 = vld [vmem:[%s348 + $0x1c8] sm:$0xff]
        %v407 = vld [vmem:[%s348 + $0x1d0] sm:$0xff]
        %v408 = vld [vmem:[%s348 + $0x1d8] sm:$0xff]
        %v409 = vld [vmem:[%s348 + $0x1e0] sm:$0xff]
        %v410 = vld [vmem:[%s348 + $0x1e8] sm:$0xff]
        %v411 = vld [vmem:[%s348 + $0x1f0] sm:$0xff]
        %v412 = vld [vmem:[%s348 + $0x1f8] sm:$0xff]
        %413 = vmatpush.msra.mxu0 %v409
        %414 = vmatpush.msra.mxu0 %v405
        %415 = vmatpush.msra.mxu0 %v401
        %416 = vmatpush.msra.mxu0 %v397
        %417 = vmatpush.msra.mxu0 %v393
        %418 = vmatpush.msra.mxu0 %v389
        %419 = vmatpush.msra.mxu0 %v385
        %420 = vmatpush.msra.mxu0 %v381
        %421 = vmatpush.msra.mxu0 %v377
        %422 = vmatpush.msra.mxu0 %v373
        %423 = vmatpush.msra.mxu0 %v369
        %424 = vmatpush.msra.mxu0 %v365
        %425 = vmatpush.msra.mxu0 %v361
        %426 = vmatpush.msra.mxu0 %v357
        %427 = vmatpush.msra.mxu0 %v353
        %428 = vmatpush.msra.mxu0 %v349
        %429 = vmatmul.f32.gmra.mxu0 %v346
        %v430 = vpop.f32.mrf.mxu0
        %v431 = vadd.f32 0.0, %v430
        %432 = vmatmul.f32.gmra.mxu0 %v347
        %v433 = vpop.f32.mrf.mxu0
        %v434 = vadd.f32 0.0, %v433
        %435 = vdwg.mxu0
        %436 = vmatpush.msra.mxu0 %v410
        %437 = vmatpush.msra.mxu0 %v406
        %438 = vmatpush.msra.mxu0 %v402
        %439 = vmatpush.msra.mxu0 %v398
        %440 = vmatpush.msra.mxu0 %v394
        %441 = vmatpush.msra.mxu0 %v390
        %442 = vmatpush.msra.mxu0 %v386
        %443 = vmatpush.msra.mxu0 %v382
        %444 = vmatpush.msra.mxu0 %v378
        %445 = vmatpush.msra.mxu0 %v374
        %446 = vmatpush.msra.mxu0 %v370
        %447 = vmatpush.msra.mxu0 %v366
        %448 = vmatpush.msra.mxu0 %v362
        %449 = vmatpush.msra.mxu0 %v358
        %450 = vmatpush.msra.mxu0 %v354
        %451 = vmatpush.msra.mxu0 %v350
        %452 = vmatmul.f32.gmra.mxu0 %v346
        %v453 = vpop.f32.mrf.mxu0
        %v454 = vadd.f32 0.0, %v453
        %455 = vmatmul.f32.gmra.mxu0 %v347
        %v456 = vpop.f32.mrf.mxu0
        %v457 = vadd.f32 0.0, %v456
        %458 = vdwg.mxu0
        %459 = vmatpush.msra.mxu0 %v411
        %460 = vmatpush.msra.mxu0 %v407
        %461 = vmatpush.msra.mxu0 %v403
        %462 = vmatpush.msra.mxu0 %v399
        %463 = vmatpush.msra.mxu0 %v395
        %464 = vmatpush.msra.mxu0 %v391
        %465 = vmatpush.msra.mxu0 %v387
        %466 = vmatpush.msra.mxu0 %v383
        %467 = vmatpush.msra.mxu0 %v379
        %468 = vmatpush.msra.mxu0 %v375
        %469 = vmatpush.msra.mxu0 %v371
        %470 = vmatpush.msra.mxu0 %v367
        %471 = vmatpush.msra.mxu0 %v363
        %472 = vmatpush.msra.mxu0 %v359
        %473 = vmatpush.msra.mxu0 %v355
        %474 = vmatpush.msra.mxu0 %v351
        %475 = vmatmul.f32.gmra.mxu0 %v346
        %v476 = vpop.f32.mrf.mxu0
        %v477 = vadd.f32 0.0, %v476
        %478 = vmatmul.f32.gmra.mxu0 %v347
        %v479 = vpop.f32.mrf.mxu0
        %v480 = vadd.f32 0.0, %v479
        %481 = vdwg.mxu0
        %482 = vmatpush.msra.mxu0 %v412
        %483 = vmatpush.msra.mxu0 %v408
        %484 = vmatpush.msra.mxu0 %v404
        %485 = vmatpush.msra.mxu0 %v400
        %486 = vmatpush.msra.mxu0 %v396
        %487 = vmatpush.msra.mxu0 %v392
        %488 = vmatpush.msra.mxu0 %v388
        %489 = vmatpush.msra.mxu0 %v384
        %490 = vmatpush.msra.mxu0 %v380
        %491 = vmatpush.msra.mxu0 %v376
        %492 = vmatpush.msra.mxu0 %v372
        %493 = vmatpush.msra.mxu0 %v368
        %494 = vmatpush.msra.mxu0 %v364
        %495 = vmatpush.msra.mxu0 %v360
        %496 = vmatpush.msra.mxu0 %v356
        %497 = vmatpush.msra.mxu0 %v352
        %498 = vmatmul.f32.gmra.mxu0 %v346
        %v499 = vpop.f32.mrf.mxu0
        %v500 = vadd.f32 0.0, %v499
        %501 = vmatmul.f32.gmra.mxu0 %v347
        %v502 = vpop.f32.mrf.mxu0
        %v503 = vadd.f32 0.0, %v502
        %504 = vdwg.mxu0
        %505 = vmatpush.msra.mxu0 %v342
        %506 = vmatpush.msra.mxu0 %v338
        %507 = vmatpush.msra.mxu0 %v334
        %508 = vmatpush.msra.mxu0 %v330
        %509 = vmatpush.msra.mxu0 %v326
        %510 = vmatpush.msra.mxu0 %v322
        %511 = vmatpush.msra.mxu0 %v318
        %512 = vmatpush.msra.mxu0 %v314
        %513 = vmatpush.msra.mxu0 %v310
        %514 = vmatpush.msra.mxu0 %v306
        %515 = vmatpush.msra.mxu0 %v302
        %516 = vmatpush.msra.mxu0 %v298
        %517 = vmatpush.msra.mxu0 %v294
        %518 = vmatpush.msra.mxu0 %v290
        %519 = vmatpush.msra.mxu0 %v286
        %520 = vmatpush.msra.mxu0 %v282
        %521 = vmatmul.f32.gmra.mxu0 %v280
        %v522 = vpop.f32.mrf.mxu0
        %v523 = vadd.f32 %v431, %v522
        %524 = vmatmul.f32.gmra.mxu0 %v281
        %v525 = vpop.f32.mrf.mxu0
        %v526 = vadd.f32 %v434, %v525
        %527 = vdwg.mxu0
        %528 = vmatpush.msra.mxu0 %v343
        %529 = vmatpush.msra.mxu0 %v339
        %530 = vmatpush.msra.mxu0 %v335
        %531 = vmatpush.msra.mxu0 %v331
        %532 = vmatpush.msra.mxu0 %v327
        %533 = vmatpush.msra.mxu0 %v323
        %534 = vmatpush.msra.mxu0 %v319
        %535 = vmatpush.msra.mxu0 %v315
        %536 = vmatpush.msra.mxu0 %v311
        %537 = vmatpush.msra.mxu0 %v307
        %538 = vmatpush.msra.mxu0 %v303
        %539 = vmatpush.msra.mxu0 %v299
        %540 = vmatpush.msra.mxu0 %v295
        %541 = vmatpush.msra.mxu0 %v291
        %542 = vmatpush.msra.mxu0 %v287
        %543 = vmatpush.msra.mxu0 %v283
        %544 = vmatmul.f32.gmra.mxu0 %v280
        %v545 = vpop.f32.mrf.mxu0
        %v546 = vadd.f32 %v454, %v545
        %547 = vmatmul.f32.gmra.mxu0 %v281
        %v548 = vpop.f32.mrf.mxu0
        %v549 = vadd.f32 %v457, %v548
        %550 = vdwg.mxu0
        %551 = vmatpush.msra.mxu0 %v344
        %552 = vmatpush.msra.mxu0 %v340
        %553 = vmatpush.msra.mxu0 %v336
        %554 = vmatpush.msra.mxu0 %v332
        %555 = vmatpush.msra.mxu0 %v328
        %556 = vmatpush.msra.mxu0 %v324
        %557 = vmatpush.msra.mxu0 %v320
        %558 = vmatpush.msra.mxu0 %v316
        %559 = vmatpush.msra.mxu0 %v312
        %560 = vmatpush.msra.mxu0 %v308
        %561 = vmatpush.msra.mxu0 %v304
        %562 = vmatpush.msra.mxu0 %v300
        %563 = vmatpush.msra.mxu0 %v296
        %564 = vmatpush.msra.mxu0 %v292
        %565 = vmatpush.msra.mxu0 %v288
        %566 = vmatpush.msra.mxu0 %v284
        %567 = vmatmul.f32.gmra.mxu0 %v280
        %v568 = vpop.f32.mrf.mxu0
        %v569 = vadd.f32 %v477, %v568
        %570 = vmatmul.f32.gmra.mxu0 %v281
        %v571 = vpop.f32.mrf.mxu0
        %v572 = vadd.f32 %v480, %v571
        %573 = vdwg.mxu0
        %574 = vmatpush.msra.mxu0 %v345
        %575 = vmatpush.msra.mxu0 %v341
        %576 = vmatpush.msra.mxu0 %v337
        %577 = vmatpush.msra.mxu0 %v333
        %578 = vmatpush.msra.mxu0 %v329
        %579 = vmatpush.msra.mxu0 %v325
        %580 = vmatpush.msra.mxu0 %v321
        %581 = vmatpush.msra.mxu0 %v317
        %582 = vmatpush.msra.mxu0 %v313
        %583 = vmatpush.msra.mxu0 %v309
        %584 = vmatpush.msra.mxu0 %v305
        %585 = vmatpush.msra.mxu0 %v301
        %586 = vmatpush.msra.mxu0 %v297
        %587 = vmatpush.msra.mxu0 %v293
        %588 = vmatpush.msra.mxu0 %v289
        %589 = vmatpush.msra.mxu0 %v285
        %590 = vmatmul.f32.gmra.mxu0 %v280
        %v591 = vpop.f32.mrf.mxu0
        %v592 = vadd.f32 %v500, %v591
        %593 = vmatmul.f32.gmra.mxu0 %v281
        %v594 = vpop.f32.mrf.mxu0
        %v595 = vadd.f32 %v503, %v594
        %596 = vdwg.mxu0
        %v597 = vld [vmem:[#allocation2 + $0x2] sm:$0xff]
        %v598 = vld [vmem:[#allocation2 + $0xa] sm:$0xff]
        %s599 = scalar_lea.vmem [#allocation6], 1024
        %v600 = vld [vmem:[%s599] sm:$0xff]
        %v601 = vld [vmem:[%s599 + $0x8] sm:$0xff]
        %v602 = vld [vmem:[%s599 + $0x10] sm:$0xff]
        %v603 = vld [vmem:[%s599 + $0x18] sm:$0xff]
        %v604 = vld [vmem:[%s599 + $0x20] sm:$0xff]
        %v605 = vld [vmem:[%s599 + $0x28] sm:$0xff]
        %v606 = vld [vmem:[%s599 + $0x30] sm:$0xff]
        %v607 = vld [vmem:[%s599 + $0x38] sm:$0xff]
        %v608 = vld [vmem:[%s599 + $0x40] sm:$0xff]
        %v609 = vld [vmem:[%s599 + $0x48] sm:$0xff]
        %v610 = vld [vmem:[%s599 + $0x50] sm:$0xff]
        %v611 = vld [vmem:[%s599 + $0x58] sm:$0xff]
        %v612 = vld [vmem:[%s599 + $0x60] sm:$0xff]
        %v613 = vld [vmem:[%s599 + $0x68] sm:$0xff]
        %v614 = vld [vmem:[%s599 + $0x70] sm:$0xff]
        %v615 = vld [vmem:[%s599 + $0x78] sm:$0xff]
        %v616 = vld [vmem:[%s599 + $0x80] sm:$0xff]
        %v617 = vld [vmem:[%s599 + $0x88] sm:$0xff]
        %v618 = vld [vmem:[%s599 + $0x90] sm:$0xff]
        %v619 = vld [vmem:[%s599 + $0x98] sm:$0xff]
        %v620 = vld [vmem:[%s599 + $0xa0] sm:$0xff]
        %v621 = vld [vmem:[%s599 + $0xa8] sm:$0xff]
        %v622 = vld [vmem:[%s599 + $0xb0] sm:$0xff]
        %v623 = vld [vmem:[%s599 + $0xb8] sm:$0xff]
        %v624 = vld [vmem:[%s599 + $0xc0] sm:$0xff]
        %v625 = vld [vmem:[%s599 + $0xc8] sm:$0xff]
        %v626 = vld [vmem:[%s599 + $0xd0] sm:$0xff]
        %v627 = vld [vmem:[%s599 + $0xd8] sm:$0xff]
        %v628 = vld [vmem:[%s599 + $0xe0] sm:$0xff]
        %v629 = vld [vmem:[%s599 + $0xe8] sm:$0xff]
        %v630 = vld [vmem:[%s599 + $0xf0] sm:$0xff]
        %v631 = vld [vmem:[%s599 + $0xf8] sm:$0xff]
        %v632 = vld [vmem:[%s599 + $0x100] sm:$0xff]
        %v633 = vld [vmem:[%s599 + $0x108] sm:$0xff]
        %v634 = vld [vmem:[%s599 + $0x110] sm:$0xff]
        %v635 = vld [vmem:[%s599 + $0x118] sm:$0xff]
        %v636 = vld [vmem:[%s599 + $0x120] sm:$0xff]
        %v637 = vld [vmem:[%s599 + $0x128] sm:$0xff]
        %v638 = vld [vmem:[%s599 + $0x130] sm:$0xff]
        %v639 = vld [vmem:[%s599 + $0x138] sm:$0xff]
        %v640 = vld [vmem:[%s599 + $0x140] sm:$0xff]
        %v641 = vld [vmem:[%s599 + $0x148] sm:$0xff]
        %v642 = vld [vmem:[%s599 + $0x150] sm:$0xff]
        %v643 = vld [vmem:[%s599 + $0x158] sm:$0xff]
        %v644 = vld [vmem:[%s599 + $0x160] sm:$0xff]
        %v645 = vld [vmem:[%s599 + $0x168] sm:$0xff]
        %v646 = vld [vmem:[%s599 + $0x170] sm:$0xff]
        %v647 = vld [vmem:[%s599 + $0x178] sm:$0xff]
        %v648 = vld [vmem:[%s599 + $0x180] sm:$0xff]
        %v649 = vld [vmem:[%s599 + $0x188] sm:$0xff]
        %v650 = vld [vmem:[%s599 + $0x190] sm:$0xff]
        %v651 = vld [vmem:[%s599 + $0x198] sm:$0xff]
        %v652 = vld [vmem:[%s599 + $0x1a0] sm:$0xff]
        %v653 = vld [vmem:[%s599 + $0x1a8] sm:$0xff]
        %v654 = vld [vmem:[%s599 + $0x1b0] sm:$0xff]
        %v655 = vld [vmem:[%s599 + $0x1b8] sm:$0xff]
        %v656 = vld [vmem:[%s599 + $0x1c0] sm:$0xff]
        %v657 = vld [vmem:[%s599 + $0x1c8] sm:$0xff]
        %v658 = vld [vmem:[%s599 + $0x1d0] sm:$0xff]
        %v659 = vld [vmem:[%s599 + $0x1d8] sm:$0xff]
        %v660 = vld [vmem:[%s599 + $0x1e0] sm:$0xff]
        %v661 = vld [vmem:[%s599 + $0x1e8] sm:$0xff]
        %v662 = vld [vmem:[%s599 + $0x1f0] sm:$0xff]
        %v663 = vld [vmem:[%s599 + $0x1f8] sm:$0xff]
        %664 = vmatpush.msra.mxu0 %v660
        %665 = vmatpush.msra.mxu0 %v656
        %666 = vmatpush.msra.mxu0 %v652
        %667 = vmatpush.msra.mxu0 %v648
        %668 = vmatpush.msra.mxu0 %v644
        %669 = vmatpush.msra.mxu0 %v640
        %670 = vmatpush.msra.mxu0 %v636
        %671 = vmatpush.msra.mxu0 %v632
        %672 = vmatpush.msra.mxu0 %v628
        %673 = vmatpush.msra.mxu0 %v624
        %674 = vmatpush.msra.mxu0 %v620
        %675 = vmatpush.msra.mxu0 %v616
        %676 = vmatpush.msra.mxu0 %v612
        %677 = vmatpush.msra.mxu0 %v608
        %678 = vmatpush.msra.mxu0 %v604
        %679 = vmatpush.msra.mxu0 %v600
        %680 = vmatmul.f32.gmra.mxu0 %v597
        %v681 = vpop.f32.mrf.mxu0
        %v682 = vadd.f32 0.0, %v681
        %683 = vmatmul.f32.gmra.mxu0 %v598
        %v684 = vpop.f32.mrf.mxu0
        %v685 = vadd.f32 0.0, %v684
        %686 = vdwg.mxu0
        %687 = vmatpush.msra.mxu0 %v661
        %688 = vmatpush.msra.mxu0 %v657
        %689 = vmatpush.msra.mxu0 %v653
        %690 = vmatpush.msra.mxu0 %v649
        %691 = vmatpush.msra.mxu0 %v645
        %692 = vmatpush.msra.mxu0 %v641
        %693 = vmatpush.msra.mxu0 %v637
        %694 = vmatpush.msra.mxu0 %v633
        %695 = vmatpush.msra.mxu0 %v629
        %696 = vmatpush.msra.mxu0 %v625
        %697 = vmatpush.msra.mxu0 %v621
        %698 = vmatpush.msra.mxu0 %v617
        %699 = vmatpush.msra.mxu0 %v613
        %700 = vmatpush.msra.mxu0 %v609
        %701 = vmatpush.msra.mxu0 %v605
        %702 = vmatpush.msra.mxu0 %v601
        %703 = vmatmul.f32.gmra.mxu0 %v597
        %v704 = vpop.f32.mrf.mxu0
        %v705 = vadd.f32 0.0, %v704
        %706 = vmatmul.f32.gmra.mxu0 %v598
        %v707 = vpop.f32.mrf.mxu0
        %v708 = vadd.f32 0.0, %v707
        %709 = vdwg.mxu0
        %710 = vmatpush.msra.mxu0 %v662
        %711 = vmatpush.msra.mxu0 %v658
        %712 = vmatpush.msra.mxu0 %v654
        %713 = vmatpush.msra.mxu0 %v650
        %714 = vmatpush.msra.mxu0 %v646
        %715 = vmatpush.msra.mxu0 %v642
        %716 = vmatpush.msra.mxu0 %v638
        %717 = vmatpush.msra.mxu0 %v634
        %718 = vmatpush.msra.mxu0 %v630
        %719 = vmatpush.msra.mxu0 %v626
        %720 = vmatpush.msra.mxu0 %v622
        %721 = vmatpush.msra.mxu0 %v618
        %722 = vmatpush.msra.mxu0 %v614
        %723 = vmatpush.msra.mxu0 %v610
        %724 = vmatpush.msra.mxu0 %v606
        %725 = vmatpush.msra.mxu0 %v602
        %726 = vmatmul.f32.gmra.mxu0 %v597
        %v727 = vpop.f32.mrf.mxu0
        %v728 = vadd.f32 0.0, %v727
        %729 = vmatmul.f32.gmra.mxu0 %v598
        %v730 = vpop.f32.mrf.mxu0
        %v731 = vadd.f32 0.0, %v730
        %732 = vdwg.mxu0
        %733 = vmatpush.msra.mxu0 %v663
        %734 = vmatpush.msra.mxu0 %v659
        %735 = vmatpush.msra.mxu0 %v655
        %736 = vmatpush.msra.mxu0 %v651
        %737 = vmatpush.msra.mxu0 %v647
        %738 = vmatpush.msra.mxu0 %v643
        %739 = vmatpush.msra.mxu0 %v639
        %740 = vmatpush.msra.mxu0 %v635
        %741 = vmatpush.msra.mxu0 %v631
        %742 = vmatpush.msra.mxu0 %v627
        %743 = vmatpush.msra.mxu0 %v623
        %744 = vmatpush.msra.mxu0 %v619
        %745 = vmatpush.msra.mxu0 %v615
        %746 = vmatpush.msra.mxu0 %v611
        %747 = vmatpush.msra.mxu0 %v607
        %748 = vmatpush.msra.mxu0 %v603
        %749 = vmatmul.f32.gmra.mxu0 %v597
        %v750 = vpop.f32.mrf.mxu0
        %v751 = vadd.f32 0.0, %v750
        %752 = vmatmul.f32.gmra.mxu0 %v598
        %v753 = vpop.f32.mrf.mxu0
        %v754 = vadd.f32 0.0, %v753
        %755 = vdwg.mxu0
        %v756 = vadd.f32 %v523, %v682
        %v757 = vadd.f32 %v546, %v705
        %v758 = vadd.f32 %v569, %v728
        %v759 = vadd.f32 %v592, %v751
        %v760 = vadd.f32 %v526, %v685
        %v761 = vadd.f32 %v549, %v708
        %v762 = vadd.f32 %v572, %v731
        %v763 = vadd.f32 %v595, %v754
        %v764 = vld [vmem:[#allocation2 + $0x3] sm:$0xff]
        %v765 = vld [vmem:[#allocation2 + $0xb] sm:$0xff]
        %s766 = scalar_lea.vmem [#allocation6], 1536
        %v767 = vld [vmem:[%s766] sm:$0xff]
        %v768 = vld [vmem:[%s766 + $0x8] sm:$0xff]
        %v769 = vld [vmem:[%s766 + $0x10] sm:$0xff]
        %v770 = vld [vmem:[%s766 + $0x18] sm:$0xff]
        %v771 = vld [vmem:[%s766 + $0x20] sm:$0xff]
        %v772 = vld [vmem:[%s766 + $0x28] sm:$0xff]
        %v773 = vld [vmem:[%s766 + $0x30] sm:$0xff]
        %v774 = vld [vmem:[%s766 + $0x38] sm:$0xff]
        %v775 = vld [vmem:[%s766 + $0x40] sm:$0xff]
        %v776 = vld [vmem:[%s766 + $0x48] sm:$0xff]
        %v777 = vld [vmem:[%s766 + $0x50] sm:$0xff]
        %v778 = vld [vmem:[%s766 + $0x58] sm:$0xff]
        %v779 = vld [vmem:[%s766 + $0x60] sm:$0xff]
        %v780 = vld [vmem:[%s766 + $0x68] sm:$0xff]
        %v781 = vld [vmem:[%s766 + $0x70] sm:$0xff]
        %v782 = vld [vmem:[%s766 + $0x78] sm:$0xff]
        %v783 = vld [vmem:[%s766 + $0x80] sm:$0xff]
        %v784 = vld [vmem:[%s766 + $0x88] sm:$0xff]
        %v785 = vld [vmem:[%s766 + $0x90] sm:$0xff]
        %v786 = vld [vmem:[%s766 + $0x98] sm:$0xff]
        %v787 = vld [vmem:[%s766 + $0xa0] sm:$0xff]
        %v788 = vld [vmem:[%s766 + $0xa8] sm:$0xff]
        %v789 = vld [vmem:[%s766 + $0xb0] sm:$0xff]
        %v790 = vld [vmem:[%s766 + $0xb8] sm:$0xff]
        %v791 = vld [vmem:[%s766 + $0xc0] sm:$0xff]
        %v792 = vld [vmem:[%s766 + $0xc8] sm:$0xff]
        %v793 = vld [vmem:[%s766 + $0xd0] sm:$0xff]
        %v794 = vld [vmem:[%s766 + $0xd8] sm:$0xff]
        %v795 = vld [vmem:[%s766 + $0xe0] sm:$0xff]
        %v796 = vld [vmem:[%s766 + $0xe8] sm:$0xff]
        %v797 = vld [vmem:[%s766 + $0xf0] sm:$0xff]
        %v798 = vld [vmem:[%s766 + $0xf8] sm:$0xff]
        %v799 = vld [vmem:[%s766 + $0x100] sm:$0xff]
        %v800 = vld [vmem:[%s766 + $0x108] sm:$0xff]
        %v801 = vld [vmem:[%s766 + $0x110] sm:$0xff]
        %v802 = vld [vmem:[%s766 + $0x118] sm:$0xff]
        %v803 = vld [vmem:[%s766 + $0x120] sm:$0xff]
        %v804 = vld [vmem:[%s766 + $0x128] sm:$0xff]
        %v805 = vld [vmem:[%s766 + $0x130] sm:$0xff]
        %v806 = vld [vmem:[%s766 + $0x138] sm:$0xff]
        %v807 = vld [vmem:[%s766 + $0x140] sm:$0xff]
        %v808 = vld [vmem:[%s766 + $0x148] sm:$0xff]
        %v809 = vld [vmem:[%s766 + $0x150] sm:$0xff]
        %v810 = vld [vmem:[%s766 + $0x158] sm:$0xff]
        %v811 = vld [vmem:[%s766 + $0x160] sm:$0xff]
        %v812 = vld [vmem:[%s766 + $0x168] sm:$0xff]
        %v813 = vld [vmem:[%s766 + $0x170] sm:$0xff]
        %v814 = vld [vmem:[%s766 + $0x178] sm:$0xff]
        %v815 = vld [vmem:[%s766 + $0x180] sm:$0xff]
        %v816 = vld [vmem:[%s766 + $0x188] sm:$0xff]
        %v817 = vld [vmem:[%s766 + $0x190] sm:$0xff]
        %v818 = vld [vmem:[%s766 + $0x198] sm:$0xff]
        %v819 = vld [vmem:[%s766 + $0x1a0] sm:$0xff]
        %v820 = vld [vmem:[%s766 + $0x1a8] sm:$0xff]
        %v821 = vld [vmem:[%s766 + $0x1b0] sm:$0xff]
        %v822 = vld [vmem:[%s766 + $0x1b8] sm:$0xff]
        %v823 = vld [vmem:[%s766 + $0x1c0] sm:$0xff]
        %v824 = vld [vmem:[%s766 + $0x1c8] sm:$0xff]
        %v825 = vld [vmem:[%s766 + $0x1d0] sm:$0xff]
        %v826 = vld [vmem:[%s766 + $0x1d8] sm:$0xff]
        %v827 = vld [vmem:[%s766 + $0x1e0] sm:$0xff]
        %v828 = vld [vmem:[%s766 + $0x1e8] sm:$0xff]
        %v829 = vld [vmem:[%s766 + $0x1f0] sm:$0xff]
        %v830 = vld [vmem:[%s766 + $0x1f8] sm:$0xff]
        %831 = vmatpush.msra.mxu0 %v827
        %832 = vmatpush.msra.mxu0 %v823
        %833 = vmatpush.msra.mxu0 %v819
        %834 = vmatpush.msra.mxu0 %v815
        %835 = vmatpush.msra.mxu0 %v811
        %836 = vmatpush.msra.mxu0 %v807
        %837 = vmatpush.msra.mxu0 %v803
        %838 = vmatpush.msra.mxu0 %v799
        %839 = vmatpush.msra.mxu0 %v795
        %840 = vmatpush.msra.mxu0 %v791
        %841 = vmatpush.msra.mxu0 %v787
        %842 = vmatpush.msra.mxu0 %v783
        %843 = vmatpush.msra.mxu0 %v779
        %844 = vmatpush.msra.mxu0 %v775
        %845 = vmatpush.msra.mxu0 %v771
        %846 = vmatpush.msra.mxu0 %v767
        %847 = vmatmul.f32.gmra.mxu0 %v764
        %v848 = vpop.f32.mrf.mxu0
        %v849 = vadd.f32 0.0, %v848
        %850 = vmatmul.f32.gmra.mxu0 %v765
        %v851 = vpop.f32.mrf.mxu0
        %v852 = vadd.f32 0.0, %v851
        %853 = vdwg.mxu0
        %854 = vmatpush.msra.mxu0 %v828
        %855 = vmatpush.msra.mxu0 %v824
        %856 = vmatpush.msra.mxu0 %v820
        %857 = vmatpush.msra.mxu0 %v816
        %858 = vmatpush.msra.mxu0 %v812
        %859 = vmatpush.msra.mxu0 %v808
        %860 = vmatpush.msra.mxu0 %v804
        %861 = vmatpush.msra.mxu0 %v800
        %862 = vmatpush.msra.mxu0 %v796
        %863 = vmatpush.msra.mxu0 %v792
        %864 = vmatpush.msra.mxu0 %v788
        %865 = vmatpush.msra.mxu0 %v784
        %866 = vmatpush.msra.mxu0 %v780
        %867 = vmatpush.msra.mxu0 %v776
        %868 = vmatpush.msra.mxu0 %v772
        %869 = vmatpush.msra.mxu0 %v768
        %870 = vmatmul.f32.gmra.mxu0 %v764
        %v871 = vpop.f32.mrf.mxu0
        %v872 = vadd.f32 0.0, %v871
        %873 = vmatmul.f32.gmra.mxu0 %v765
        %v874 = vpop.f32.mrf.mxu0
        %v875 = vadd.f32 0.0, %v874
        %876 = vdwg.mxu0
        %877 = vmatpush.msra.mxu0 %v829
        %878 = vmatpush.msra.mxu0 %v825
        %879 = vmatpush.msra.mxu0 %v821
        %880 = vmatpush.msra.mxu0 %v817
        %881 = vmatpush.msra.mxu0 %v813
        %882 = vmatpush.msra.mxu0 %v809
        %883 = vmatpush.msra.mxu0 %v805
        %884 = vmatpush.msra.mxu0 %v801
        %885 = vmatpush.msra.mxu0 %v797
        %886 = vmatpush.msra.mxu0 %v793
        %887 = vmatpush.msra.mxu0 %v789
        %888 = vmatpush.msra.mxu0 %v785
        %889 = vmatpush.msra.mxu0 %v781
        %890 = vmatpush.msra.mxu0 %v777
        %891 = vmatpush.msra.mxu0 %v773
        %892 = vmatpush.msra.mxu0 %v769
        %893 = vmatmul.f32.gmra.mxu0 %v764
        %v894 = vpop.f32.mrf.mxu0
        %v895 = vadd.f32 0.0, %v894
        %896 = vmatmul.f32.gmra.mxu0 %v765
        %v897 = vpop.f32.mrf.mxu0
        %v898 = vadd.f32 0.0, %v897
        %899 = vdwg.mxu0
        %900 = vmatpush.msra.mxu0 %v830
        %901 = vmatpush.msra.mxu0 %v826
        %902 = vmatpush.msra.mxu0 %v822
        %903 = vmatpush.msra.mxu0 %v818
        %904 = vmatpush.msra.mxu0 %v814
        %905 = vmatpush.msra.mxu0 %v810
        %906 = vmatpush.msra.mxu0 %v806
        %907 = vmatpush.msra.mxu0 %v802
        %908 = vmatpush.msra.mxu0 %v798
        %909 = vmatpush.msra.mxu0 %v794
        %910 = vmatpush.msra.mxu0 %v790
        %911 = vmatpush.msra.mxu0 %v786
        %912 = vmatpush.msra.mxu0 %v782
        %913 = vmatpush.msra.mxu0 %v778
        %914 = vmatpush.msra.mxu0 %v774
        %915 = vmatpush.msra.mxu0 %v770
        %916 = vmatmul.f32.gmra.mxu0 %v764
        %v917 = vpop.f32.mrf.mxu0
        %v918 = vadd.f32 0.0, %v917
        %919 = vmatmul.f32.gmra.mxu0 %v765
        %v920 = vpop.f32.mrf.mxu0
        %v921 = vadd.f32 0.0, %v920
        %922 = vdwg.mxu0
        %v923 = vadd.f32 %v756, %v849
        %v924 = vadd.f32 %v757, %v872
        %v925 = vadd.f32 %v758, %v895
        %v926 = vadd.f32 %v759, %v918
        %v927 = vadd.f32 %v760, %v852
        %v928 = vadd.f32 %v761, %v875
        %v929 = vadd.f32 %v762, %v898
        %v930 = vadd.f32 %v763, %v921
        %v931 = vld [vmem:[#allocation2 + $0x4] sm:$0xff]
        %v932 = vld [vmem:[#allocation2 + $0xc] sm:$0xff]
        %s933 = scalar_lea.vmem [#allocation6], 2048
        %v934 = vld [vmem:[%s933] sm:$0xff]
        %v935 = vld [vmem:[%s933 + $0x8] sm:$0xff]
        %v936 = vld [vmem:[%s933 + $0x10] sm:$0xff]
        %v937 = vld [vmem:[%s933 + $0x18] sm:$0xff]
        %v938 = vld [vmem:[%s933 + $0x20] sm:$0xff]
        %v939 = vld [vmem:[%s933 + $0x28] sm:$0xff]
        %v940 = vld [vmem:[%s933 + $0x30] sm:$0xff]
        %v941 = vld [vmem:[%s933 + $0x38] sm:$0xff]
        %v942 = vld [vmem:[%s933 + $0x40] sm:$0xff]
        %v943 = vld [vmem:[%s933 + $0x48] sm:$0xff]
        %v944 = vld [vmem:[%s933 + $0x50] sm:$0xff]
        %v945 = vld [vmem:[%s933 + $0x58] sm:$0xff]
        %v946 = vld [vmem:[%s933 + $0x60] sm:$0xff]
        %v947 = vld [vmem:[%s933 + $0x68] sm:$0xff]
        %v948 = vld [vmem:[%s933 + $0x70] sm:$0xff]
        %v949 = vld [vmem:[%s933 + $0x78] sm:$0xff]
        %v950 = vld [vmem:[%s933 + $0x80] sm:$0xff]
        %v951 = vld [vmem:[%s933 + $0x88] sm:$0xff]
        %v952 = vld [vmem:[%s933 + $0x90] sm:$0xff]
        %v953 = vld [vmem:[%s933 + $0x98] sm:$0xff]
        %v954 = vld [vmem:[%s933 + $0xa0] sm:$0xff]
        %v955 = vld [vmem:[%s933 + $0xa8] sm:$0xff]
        %v956 = vld [vmem:[%s933 + $0xb0] sm:$0xff]
        %v957 = vld [vmem:[%s933 + $0xb8] sm:$0xff]
        %v958 = vld [vmem:[%s933 + $0xc0] sm:$0xff]
        %v959 = vld [vmem:[%s933 + $0xc8] sm:$0xff]
        %v960 = vld [vmem:[%s933 + $0xd0] sm:$0xff]
        %v961 = vld [vmem:[%s933 + $0xd8] sm:$0xff]
        %v962 = vld [vmem:[%s933 + $0xe0] sm:$0xff]
        %v963 = vld [vmem:[%s933 + $0xe8] sm:$0xff]
        %v964 = vld [vmem:[%s933 + $0xf0] sm:$0xff]
        %v965 = vld [vmem:[%s933 + $0xf8] sm:$0xff]
        %v966 = vld [vmem:[%s933 + $0x100] sm:$0xff]
        %v967 = vld [vmem:[%s933 + $0x108] sm:$0xff]
        %v968 = vld [vmem:[%s933 + $0x110] sm:$0xff]
        %v969 = vld [vmem:[%s933 + $0x118] sm:$0xff]
        %v970 = vld [vmem:[%s933 + $0x120] sm:$0xff]
        %v971 = vld [vmem:[%s933 + $0x128] sm:$0xff]
        %v972 = vld [vmem:[%s933 + $0x130] sm:$0xff]
        %v973 = vld [vmem:[%s933 + $0x138] sm:$0xff]
        %v974 = vld [vmem:[%s933 + $0x140] sm:$0xff]
        %v975 = vld [vmem:[%s933 + $0x148] sm:$0xff]
        %v976 = vld [vmem:[%s933 + $0x150] sm:$0xff]
        %v977 = vld [vmem:[%s933 + $0x158] sm:$0xff]
        %v978 = vld [vmem:[%s933 + $0x160] sm:$0xff]
        %v979 = vld [vmem:[%s933 + $0x168] sm:$0xff]
        %v980 = vld [vmem:[%s933 + $0x170] sm:$0xff]
        %v981 = vld [vmem:[%s933 + $0x178] sm:$0xff]
        %v982 = vld [vmem:[%s933 + $0x180] sm:$0xff]
        %v983 = vld [vmem:[%s933 + $0x188] sm:$0xff]
        %v984 = vld [vmem:[%s933 + $0x190] sm:$0xff]
        %v985 = vld [vmem:[%s933 + $0x198] sm:$0xff]
        %v986 = vld [vmem:[%s933 + $0x1a0] sm:$0xff]
        %v987 = vld [vmem:[%s933 + $0x1a8] sm:$0xff]
        %v988 = vld [vmem:[%s933 + $0x1b0] sm:$0xff]
        %v989 = vld [vmem:[%s933 + $0x1b8] sm:$0xff]
        %v990 = vld [vmem:[%s933 + $0x1c0] sm:$0xff]
        %v991 = vld [vmem:[%s933 + $0x1c8] sm:$0xff]
        %v992 = vld [vmem:[%s933 + $0x1d0] sm:$0xff]
        %v993 = vld [vmem:[%s933 + $0x1d8] sm:$0xff]
        %v994 = vld [vmem:[%s933 + $0x1e0] sm:$0xff]
        %v995 = vld [vmem:[%s933 + $0x1e8] sm:$0xff]
        %v996 = vld [vmem:[%s933 + $0x1f0] sm:$0xff]
        %v997 = vld [vmem:[%s933 + $0x1f8] sm:$0xff]
        %998 = vmatpush.msra.mxu0 %v994
        %999 = vmatpush.msra.mxu0 %v990
        %1000 = vmatpush.msra.mxu0 %v986
        %1001 = vmatpush.msra.mxu0 %v982
        %1002 = vmatpush.msra.mxu0 %v978
        %1003 = vmatpush.msra.mxu0 %v974
        %1004 = vmatpush.msra.mxu0 %v970
        %1005 = vmatpush.msra.mxu0 %v966
        %1006 = vmatpush.msra.mxu0 %v962
        %1007 = vmatpush.msra.mxu0 %v958
        %1008 = vmatpush.msra.mxu0 %v954
        %1009 = vmatpush.msra.mxu0 %v950
        %1010 = vmatpush.msra.mxu0 %v946
        %1011 = vmatpush.msra.mxu0 %v942
        %1012 = vmatpush.msra.mxu0 %v938
        %1013 = vmatpush.msra.mxu0 %v934
        %1014 = vmatmul.f32.gmra.mxu0 %v931
        %v1015 = vpop.f32.mrf.mxu0
        %v1016 = vadd.f32 0.0, %v1015
        %1017 = vmatmul.f32.gmra.mxu0 %v932
        %v1018 = vpop.f32.mrf.mxu0
        %v1019 = vadd.f32 0.0, %v1018
        %1020 = vdwg.mxu0
        %1021 = vmatpush.msra.mxu0 %v995
        %1022 = vmatpush.msra.mxu0 %v991
        %1023 = vmatpush.msra.mxu0 %v987
        %1024 = vmatpush.msra.mxu0 %v983
        %1025 = vmatpush.msra.mxu0 %v979
        %1026 = vmatpush.msra.mxu0 %v975
        %1027 = vmatpush.msra.mxu0 %v971
        %1028 = vmatpush.msra.mxu0 %v967
        %1029 = vmatpush.msra.mxu0 %v963
        %1030 = vmatpush.msra.mxu0 %v959
        %1031 = vmatpush.msra.mxu0 %v955
        %1032 = vmatpush.msra.mxu0 %v951
        %1033 = vmatpush.msra.mxu0 %v947
        %1034 = vmatpush.msra.mxu0 %v943
        %1035 = vmatpush.msra.mxu0 %v939
        %1036 = vmatpush.msra.mxu0 %v935
        %1037 = vmatmul.f32.gmra.mxu0 %v931
        %v1038 = vpop.f32.mrf.mxu0
        %v1039 = vadd.f32 0.0, %v1038
        %1040 = vmatmul.f32.gmra.mxu0 %v932
        %v1041 = vpop.f32.mrf.mxu0
        %v1042 = vadd.f32 0.0, %v1041
        %1043 = vdwg.mxu0
        %1044 = vmatpush.msra.mxu0 %v996
        %1045 = vmatpush.msra.mxu0 %v992
        %1046 = vmatpush.msra.mxu0 %v988
        %1047 = vmatpush.msra.mxu0 %v984
        %1048 = vmatpush.msra.mxu0 %v980
        %1049 = vmatpush.msra.mxu0 %v976
        %1050 = vmatpush.msra.mxu0 %v972
        %1051 = vmatpush.msra.mxu0 %v968
        %1052 = vmatpush.msra.mxu0 %v964
        %1053 = vmatpush.msra.mxu0 %v960
        %1054 = vmatpush.msra.mxu0 %v956
        %1055 = vmatpush.msra.mxu0 %v952
        %1056 = vmatpush.msra.mxu0 %v948
        %1057 = vmatpush.msra.mxu0 %v944
        %1058 = vmatpush.msra.mxu0 %v940
        %1059 = vmatpush.msra.mxu0 %v936
        %1060 = vmatmul.f32.gmra.mxu0 %v931
        %v1061 = vpop.f32.mrf.mxu0
        %v1062 = vadd.f32 0.0, %v1061
        %1063 = vmatmul.f32.gmra.mxu0 %v932
        %v1064 = vpop.f32.mrf.mxu0
        %v1065 = vadd.f32 0.0, %v1064
        %1066 = vdwg.mxu0
        %1067 = vmatpush.msra.mxu0 %v997
        %1068 = vmatpush.msra.mxu0 %v993
        %1069 = vmatpush.msra.mxu0 %v989
        %1070 = vmatpush.msra.mxu0 %v985
        %1071 = vmatpush.msra.mxu0 %v981
        %1072 = vmatpush.msra.mxu0 %v977
        %1073 = vmatpush.msra.mxu0 %v973
        %1074 = vmatpush.msra.mxu0 %v969
        %1075 = vmatpush.msra.mxu0 %v965
        %1076 = vmatpush.msra.mxu0 %v961
        %1077 = vmatpush.msra.mxu0 %v957
        %1078 = vmatpush.msra.mxu0 %v953
        %1079 = vmatpush.msra.mxu0 %v949
        %1080 = vmatpush.msra.mxu0 %v945
        %1081 = vmatpush.msra.mxu0 %v941
        %1082 = vmatpush.msra.mxu0 %v937
        %1083 = vmatmul.f32.gmra.mxu0 %v931
        %v1084 = vpop.f32.mrf.mxu0
        %v1085 = vadd.f32 0.0, %v1084
        %1086 = vmatmul.f32.gmra.mxu0 %v932
        %v1087 = vpop.f32.mrf.mxu0
        %v1088 = vadd.f32 0.0, %v1087
        %1089 = vdwg.mxu0
        %v1090 = vadd.f32 %v923, %v1016
        %v1091 = vadd.f32 %v924, %v1039
        %v1092 = vadd.f32 %v925, %v1062
        %v1093 = vadd.f32 %v926, %v1085
        %v1094 = vadd.f32 %v927, %v1019
        %v1095 = vadd.f32 %v928, %v1042
        %v1096 = vadd.f32 %v929, %v1065
        %v1097 = vadd.f32 %v930, %v1088
        %v1098 = vld [vmem:[#allocation8] sm:$0xf]
        %v1100 = vperm.slane %v1098, 0
        %v1101 = vperm.slane %v1098, 1
        %v1102 = vperm.slane %v1098, 2
        %v1103 = vperm.slane %v1098, 3
        %v1108 = vadd.f32 %v1090, %v1100
        %v1109 = vadd.f32 %v1091, %v1101
        %v1110 = vadd.f32 %v1092, %v1102
        %v1111 = vadd.f32 %v1093, %v1103
        %v1112 = vadd.f32 %v1094, %v1100
        %v1113 = vadd.f32 %v1095, %v1101
        %v1114 = vadd.f32 %v1096, %v1102
        %v1115 = vadd.f32 %v1097, %v1103
        %v1116 = vmax.f32 %v1108, -6.0
        %v1117 = vmax.f32 %v1109, -6.0
        %v1118 = vmax.f32 %v1110, -6.0
        %v1119 = vmax.f32 %v1111, -6.0
        %v1120 = vmax.f32 %v1112, -6.0
        %v1121 = vmax.f32 %v1113, -6.0
        %v1122 = vmax.f32 %v1114, -6.0
        %v1123 = vmax.f32 %v1115, -6.0
        %v1124 = vmin.f32 %v1116, 6.0
        %v1125 = vmin.f32 %v1117, 6.0
        %v1126 = vmin.f32 %v1118, 6.0
        %v1127 = vmin.f32 %v1119, 6.0
        %v1128 = vmin.f32 %v1120, 6.0
        %v1129 = vmin.f32 %v1121, 6.0
        %v1130 = vmin.f32 %v1122, 6.0
        %v1131 = vmin.f32 %v1123, 6.0
        %1132 = vst [vmem:[%s221] sm:$0xff] %v1124
        %1133 = vst [vmem:[%s221 + $0x8] sm:$0xff] %v1125
        %1134 = vst [vmem:[%s221 + $0x10] sm:$0xff] %v1126
        %1135 = vst [vmem:[%s221 + $0x18] sm:$0xff] %v1127
        %1136 = vst [vmem:[%s221 + $0x20] sm:$0xff] %v1128
        %1137 = vst [vmem:[%s221 + $0x28] sm:$0xff] %v1129
        %1138 = vst [vmem:[%s221 + $0x30] sm:$0xff] %v1130
        %1139 = vst [vmem:[%s221 + $0x38] sm:$0xff] %v1131
        %s1140 = sand.u32 %s97, 1
        %s1141 = scalar_lea.sflag [#allocation5], %s1140
        %s1142 = sand.u32 %s97, 1
        %s1143 = smul.addr %s1142, 64
        %s1144 = scalar_lea.vmem [#allocation9], %s1143
        // Predicated region
        $region45: #{tpu_custom_call.1} parent=31 // pred_check
          %p1145 = pneg %p107
        $region46: #{tpu_custom_call.1} parent=31 // pred_check_branch
          %1147 = sbr.rel (%p1145) target = $region48
        $region47: #{tpu_custom_call.1} parent=31 // pred_region
          %1149 = vsyncadd %s1141, 0
          %s1150 = smul.addr %s21, 8
          %s1151 = smul.addr %s1150, 8
          %s1152 = scalar_lea.hbm %s3, %s1151
          %s1153 = sshll.u32 %s1144, 4
          %s1154 = int_to_ptr.vmem [resolvable:$true] %s1153
          %s1155 = sshll.u32 %s1152, 4
          %s1156 = int_to_ptr.hbm [resolvable:$true] %s1155
          %1161 = dma.vmem_to_hbm [thread:$0]  %s1154, 1024, %s1156, %s1141, 512, 512, 32
        $region48: #{tpu_custom_call.1} parent=31 // pred_fallthru
          _
      $region32: #{tpu_custom_call.1} parent=5 // pred_fallthru
        _
      %p1162 = scmp.le.s32.totalorder 2, %s16
      // Predicated region
      $region49: #{tpu_custom_call.1} parent=5 // pred_check
        %p1163 = pneg %p1162
      $region50: #{tpu_custom_call.1} parent=5 // pred_check_branch
        %1165 = sbr.rel (%p1163) target = $region52
      $region51: #{tpu_custom_call.1} parent=5 // pred_region
        %s1166 = ssub.s32 %s16, 2
        // Predicated region
        $region53: #{tpu_custom_call.1} parent=51 // pred_check
          %p1167 = pneg %p113
        $region54: #{tpu_custom_call.1} parent=51 // pred_check_branch
          %1169 = sbr.rel (%p1167) target = $region56
        $region55: #{tpu_custom_call.1} parent=51 // pred_region
          %s1170 = sand.u32 %s98, 1
          %s1171 = scalar_lea.sflag [#allocation5], %s1170
          %s1172 = sand.u32 %s98, 1
          %s1173 = smul.addr %s1172, 64
          %s1174 = scalar_lea.vmem [#allocation9], %s1173
          %1176 = dma.done %s1171, 1024
        $region56: #{tpu_custom_call.1} parent=51 // pred_fallthru
          _
      $region52: #{tpu_custom_call.1} parent=5 // pred_fallthru
        _
    $region6: #{tpu_custom_call.1} parent=1 // loop_footer
      %s20 = sadd.s32 1, %s16
    $region7: #{tpu_custom_call.1} parent=1 // loop_footer_branch
      %15 = sbr.rel target = $region3
    $region8: #{tpu_custom_call.1} parent=1 // loop_exit
      _
    %1177 = vsyncpa [#allocation4], 1
    %s1178 = scalar_lea.sflag [#allocation4], 1
    %1179 = vsyncpa %s1178, 1
    %1180 = vsyncpa [#allocation7], 1
    %1181 = vsyncpa [#allocation5], 1
    %s1182 = scalar_lea.sflag [#allocation5], 1
    %1183 = vsyncpa %s1182, 1

</llo_original>
